<compile_context>
chip_gen: v5e
topology: v5e:2x2
jax: 0.10.0
libtpu: 0.0.40
codegen_flags: <defaults>
</compile_context>

<pallas_src>
import jax
import jax.numpy as jnp
from jax.experimental import pallas as pl
from jax.experimental.pallas import tpu as pltpu


# ----------------------------- kernels -------------------------------------


def _tuple2_kernel(x_ref, o0_ref, o1_ref):
    # 1 vld + 2 vst per vreg; fully hidden under the HBM DMAs at these tiles.
    v = x_ref[...]
    o0_ref[...] = v
    o1_ref[...] = v


def _tuple2_kernel_aliased(x_ref, o0_hbm_ref, o1_ref):
    # out0 is aliased to the (donated) input HBM buffer -> nothing to write.
    del o0_hbm_ref
    o1_ref[...] = x_ref[...]


# --------------------------- tile sizing ------------------------------------


_TARGET_BLOCK_BYTES = 4 << 20   # per-block DMA granule (sweet spot 2-8 MiB)
_SPLIT_BYTES = 8 << 20          # above this, force >=4 row blocks (megacore)


def _round_down(a, b):
    return (a // b) * b


def _row_align(dtype):
    # Native packed sublane tile: f32 -> 8, bf16/f16 -> 16, int8/fp8 -> 32.
    itemsize = jnp.dtype(dtype).itemsize
    return max(8, 8 * (4 // max(1, itemsize)))


def _flatten_view(x):
    """Pick a 2-D, preferably lane-dense view of x (reshape is free)."""
    total = int(x.size)
    if total > 0 and total % 128 == 0:
        for c in (1024, 512, 256, 128):
            if total % c == 0:
                return x.reshape(total // c, c)
    if x.ndim == 0:
        return x.reshape(1, 1)
    if x.ndim == 1:
        return x.reshape(1, -1)
    return x.reshape(-1, x.shape[-1])


def _pick_tiles(M, N, dtype):
    itemsize = jnp.dtype(dtype).itemsize
    row_align = _row_align(dtype)

    # Column block: full array width by default (always a legal BlockSpec dim;
    # Pallas masks a ragged edge).  Only tile columns (multiples of 128) when a
    # single row-aligned stripe at full width would blow the per-block budget.
    tile_cols = N
    if N >= 512 and row_align * N * itemsize > _TARGET_BLOCK_BYTES:
        tile_cols = max(
            128, _round_down(_TARGET_BLOCK_BYTES // (row_align * itemsize), 128))
        tile_cols = min(tile_cols, _round_down(N, 128))

    # Row block: bytes-per-block target rather than a fixed row cap.
    row_bytes = max(1, tile_cols * itemsize)
    budget_rows = max(row_align,
                      _round_down(_TARGET_BLOCK_BYTES // row_bytes, row_align))

    # Megacore / pipelining: for large inputs guarantee >= ~4 row blocks so the
    # two v7x TensorCores (and the DMA pipeline everywhere) both get work.
    total_bytes = M * N * itemsize
    if total_bytes >= _SPLIT_BYTES and M >= 4 * row_align:
        split_rows = max(row_align, _round_down(-(-M // 4), row_align))
        budget_rows = min(budget_rows, split_rows)

    # Full-extent rows when everything fits in one stripe (always legal),
    # otherwise a row_align-multiple block with a masked last block.
    tile_rows = M if M <= budget_rows else budget_rows
    return tile_rows, tile_cols


# ----------------------------- wrapper --------------------------------------


def _tuple2_2d(x2, *, donate_input):
    M, N = x2.shape
    dtype = x2.dtype
    itemsize = jnp.dtype(dtype).itemsize

    tile_rows, tile_cols = _pick_tiles(M, N, dtype)
    block_bytes = tile_rows * tile_cols * itemsize
    n_bufs = 4 if donate_input else 6   # (1 in + 1|2 out) x double-buffered
    vmem_limit = int(min(64 << 20,
                         max(16 << 20, n_bufs * block_bytes + (4 << 20))))

    grid = (pl.cdiv(M, tile_rows), pl.cdiv(N, tile_cols))
    tiled_spec = pl.BlockSpec((tile_rows, tile_cols), lambda i, j: (i, j))
    out_shape = (
        jax.ShapeDtypeStruct((M, N), dtype),
        jax.ShapeDtypeStruct((M, N), dtype),
    )

    n_written = 1 if donate_input else 2
    cost = pl.CostEstimate(
        flops=0,
        transcendentals=0,
        bytes_accessed=(1 + n_written) * M * N * itemsize,
    )

    if donate_input:
        # Opt-in: only avoids a copy if x is actually donated at the jit
        # boundary; out0 aliases the input buffer and is never DMA'd.
        kernel = _tuple2_kernel_aliased
        out_specs = (pl.BlockSpec(memory_space=pl.ANY), tiled_spec)
        io_aliases = {0: 0}
    else:
        kernel = _tuple2_kernel
        out_specs = (tiled_spec, tiled_spec)
        io_aliases = {}

    return pl.pallas_call(
        kernel,
        out_shape=out_shape,
        grid_spec=pltpu.PrefetchScalarGridSpec(
            num_scalar_prefetch=0,
            grid=grid,
            in_specs=[tiled_spec],
            out_specs=out_specs,
        ),
        compiler_params=pltpu.CompilerParams(
            dimension_semantics=("parallel", "parallel"),
            vmem_limit_bytes=vmem_limit,
        ),
        input_output_aliases=io_aliases,
        cost_estimate=cost,
    )(x2)


def tuple2(x, *, donate_input=False):
    """Pallas TPU implementation of Tuple2Module.forward: returns (x, x)."""
    orig_shape = x.shape
    x2 = _flatten_view(x)
    y0, y1 = _tuple2_2d(x2, donate_input=donate_input)
    return y0.reshape(orig_shape), y1.reshape(orig_shape)


# ------------------------------ demo / test ----------------------------------


if __name__ == "__main__":
    key = jax.random.PRNGKey(0)
    k0, k1, k2 = jax.random.split(key, 3)

    # 4-D activation-like input; flattens to a lane-dense (2, 1024) view.
    x_a = jax.random.normal(k0, (2, 4, 16, 16), dtype=jnp.float32)
    y0a, y1a = tuple2(x_a)
    jax.block_until_ready((y0a, y1a))
    assert y0a.shape == x_a.shape and y1a.shape == x_a.shape
    assert y0a.dtype == x_a.dtype and y1a.dtype == x_a.dtype
    assert jnp.array_equal(y0a, x_a) and jnp.array_equal(y1a, x_a)

    # bf16 with a non-128-multiple last dim but a 128-multiple element count:
    # flattens to a lane-dense (9, 256) view, no pad / slice HBM passes.
    x_b = jax.random.normal(k1, (24, 96), dtype=jnp.bfloat16)
    y0b, y1b = tuple2(x_b)
    jax.block_until_ready((y0b, y1b))
    assert y0b.shape == x_b.shape and y0b.dtype == x_b.dtype
    assert jnp.array_equal(y0b, x_b) and jnp.array_equal(y1b, x_b)

    # Fully ragged case (element count not a multiple of 128): full-extent
    # blocks, Pallas masks the ragged edge -- still exactly 1R + 2W.
    x_c = jax.random.normal(k2, (7, 33), dtype=jnp.float32)
    y0c, y1c = tuple2(x_c)
    jax.block_until_ready((y0c, y1c))
    assert jnp.array_equal(y0c, x_c) and jnp.array_equal(y1c, x_c)

    # Opt-in donation path: out0 aliases the input, only out1 is materialized.
    y0d, y1d = tuple2(x_a, donate_input=True)
    jax.block_until_ready((y0d, y1d))
    assert jnp.array_equal(y0d, x_a) and jnp.array_equal(y1d, x_a)

    print("KERNEL_OK")
</pallas_src>

<mosaic_0001>
module attributes {stable_mosaic.version = 11 : i64} {
  func.func @_tuple2_kernel(%arg0: i32, %arg1: i32, %arg2: memref<2x1024xf32, #tpu.memory_space<vmem>>, %arg3: memref<2x1024xf32, #tpu.memory_space<vmem>>, %arg4: memref<2x1024xf32, #tpu.memory_space<vmem>>) attributes {dimension_semantics = [#tpu.dimension_semantics<parallel>, #tpu.dimension_semantics<parallel>], iteration_bounds = array<i64: 1, 1>, scalar_prefetch = 0 : i64, scratch_operands = 0 : i64, tpu.core_type = #tpu.core_type<tc>, window_params = [{transform_indices = @transform_0, window_bounds = array<i64: 2, 1024>}, {transform_indices = @transform_1, window_bounds = array<i64: 2, 1024>}, {transform_indices = @transform_2, window_bounds = array<i64: 2, 1024>}]} {
    %c0 = arith.constant 0 : index
    %c0_0 = arith.constant 0 : index
    %0 = vector.load %arg2[%c0, %c0_0] : memref<2x1024xf32, #tpu.memory_space<vmem>>, vector<2x1024xf32>
    %c0_1 = arith.constant 0 : index
    %c0_2 = arith.constant 0 : index
    %1 = vector.load %arg3[%c0_1, %c0_2] : memref<2x1024xf32, #tpu.memory_space<vmem>>, vector<2x1024xf32>
    tpu.vector_store %arg3[%c0_1, %c0_2], %0 {strides = array<i32>} : memref<2x1024xf32, #tpu.memory_space<vmem>>, vector<2x1024xf32>,
    %c0_3 = arith.constant 0 : index
    %c0_4 = arith.constant 0 : index
    %2 = vector.load %arg4[%c0_3, %c0_4] : memref<2x1024xf32, #tpu.memory_space<vmem>>, vector<2x1024xf32>
    tpu.vector_store %arg4[%c0_3, %c0_4], %0 {strides = array<i32>} : memref<2x1024xf32, #tpu.memory_space<vmem>>, vector<2x1024xf32>,
    return
  }
  func.func @transform_0(%arg0: i32, %arg1: i32) -> (i32, i32) {
    %c0_i32 = arith.constant 0 : i32
    return %arg0, %arg1 : i32, i32
  }
  func.func @transform_1(%arg0: i32, %arg1: i32) -> (i32, i32) {
    %c0_i32 = arith.constant 0 : i32
    return %arg0, %arg1 : i32, i32
  }
  func.func @transform_2(%arg0: i32, %arg1: i32) -> (i32, i32) {
    %c0_i32 = arith.constant 0 : i32
    return %arg0, %arg1 : i32, i32
  }
}

</mosaic_0001>

<llo_original>
// kernel: tpu_custom_call.1
$region0: #{tpu_custom_call.1}
  #allocation0 [shape = 'u32[]', space=smem, size = 0x4, offset = 0x4, fixed_abs, tag = 'smem constant byte address 0x4 - core index']
  #allocation1 [shape = 'u32[72,128]{1,0:T(1,128)}', space=vmem, size = 0x9000, scoped, tag = 'internal scratch']
  %s0 = inlined_call_operand.hbm [shape: f32[2,1024], index: 0, kind: input, shape index: {}]
  %s1 = inlined_call_operand.hbm [shape: f32[2,1024], index: 1, kind: output, shape index: {0}]
  %s2 = inlined_call_operand.hbm [shape: f32[2,1024], index: 2, kind: output, shape index: {1}]
  %3 = xla_tuple %s1, %s2
  %s4 = sld [smem:[#allocation0]]
  $region26: #{tpu_custom_call.1} parent=0
    _
  %s6 = ssub.s32 1, %s4
  %s7 = scalar_select 0, %s6, %s4
  $region1: #{tpu_custom_call.1} parent=0
    #allocation2 [shape = 'u8[8192]{0}', space=vmem, size = 0x2000, scoped, tag = 'input window, operand 0, single buffered']
    #allocation3 [shape = 's32[1]{0}', space=sflag, size = 0x4, scoped, tag = 'scoped memory for tpu_custom_call.1']
    #allocation4 [shape = 's32[1]{0}', space=sflag, size = 0x4, scoped, tag = 'scoped memory for tpu_custom_call.1']
    #allocation5 [shape = 'u8[8192]{0}', space=vmem, size = 0x2000, scoped, tag = 'output window, operand 0, single buffered']
    #allocation6 [shape = 'u8[8192]{0}', space=vmem, size = 0x2000, scoped, tag = 'output window, operand 1, single buffered']
    #allocation7 [shape = 's32[1]{0}', space=sflag, size = 0x4, scoped, tag = 'scoped memory for tpu_custom_call.1']
    %8 = vsyncpa [#allocation3], 0
    %9 = vsyncpa [#allocation4], 0
    %10 = vsyncpa [#allocation7], 0
    // Predicated region
    $region2: #{tpu_custom_call.1} parent=1 // pred_check
      _
    $region3: #{tpu_custom_call.1} parent=1 // pred_check_branch
      %12 = sbr.rel (0) target = $region5
    $region4: #{tpu_custom_call.1} parent=1 // pred_region
      %14 = vsyncadd [#allocation3], 0
      %s16 = sshll.u32 %s0, 4
      %s17 = int_to_ptr.hbm [resolvable:$true] %s16
      %s18 = sshll.u32 [#allocation2], 4
      %s19 = int_to_ptr.vmem [resolvable:$true] %s18
      %21 = dma.hbm_to_vmem [thread:$0]  %s17, 256, %s19, [#allocation3]
    $region5: #{tpu_custom_call.1} parent=1 // pred_fallthru
      _
    // Predicated region
    $region6: #{tpu_custom_call.1} parent=1 // pred_check
      _
    $region7: #{tpu_custom_call.1} parent=1 // pred_check_branch
      %23 = sbr.rel (0) target = $region9
    $region8: #{tpu_custom_call.1} parent=1 // pred_region
      %25 = dma.done [#allocation3], 256
    $region9: #{tpu_custom_call.1} parent=1 // pred_fallthru
      _
    %v26 = vld [vmem:[#allocation2] sm:$0xff]
    %v27 = vld [vmem:[#allocation2 + $0x8] sm:$0xff]
    %28 = vst [vmem:[#allocation5] sm:$0xff] %v26
    %29 = vst [vmem:[#allocation5 + $0x8] sm:$0xff] %v27
    %30 = vst [vmem:[#allocation6] sm:$0xff] %v26
    %31 = vst [vmem:[#allocation6 + $0x8] sm:$0xff] %v27
    // Predicated region
    $region10: #{tpu_custom_call.1} parent=1 // pred_check
      _
    $region11: #{tpu_custom_call.1} parent=1 // pred_check_branch
      %33 = sbr.rel (0) target = $region13
    $region12: #{tpu_custom_call.1} parent=1 // pred_region
      %35 = vsyncadd [#allocation4], 0
      %s37 = sshll.u32 [#allocation5], 4
      %s38 = int_to_ptr.vmem [resolvable:$true] %s37
      %s39 = sshll.u32 %s1, 4
      %s40 = int_to_ptr.hbm [resolvable:$true] %s39
      %42 = dma.vmem_to_hbm [thread:$0]  %s38, 256, %s40, [#allocation4]
    $region13: #{tpu_custom_call.1} parent=1 // pred_fallthru
      _
    // Predicated region
    $region14: #{tpu_custom_call.1} parent=1 // pred_check
      _
    $region15: #{tpu_custom_call.1} parent=1 // pred_check_branch
      %44 = sbr.rel (0) target = $region17
    $region16: #{tpu_custom_call.1} parent=1 // pred_region
      %46 = vsyncadd [#allocation7], 0
      %s48 = sshll.u32 [#allocation6], 4
      %s49 = int_to_ptr.vmem [resolvable:$true] %s48
      %s50 = sshll.u32 %s2, 4
      %s51 = int_to_ptr.hbm [resolvable:$true] %s50
      %53 = dma.vmem_to_hbm [thread:$0]  %s49, 256, %s51, [#allocation7]
    $region17: #{tpu_custom_call.1} parent=1 // pred_fallthru
      _
    // Predicated region
    $region18: #{tpu_custom_call.1} parent=1 // pred_check
      _
    $region19: #{tpu_custom_call.1} parent=1 // pred_check_branch
      %55 = sbr.rel (0) target = $region21
    $region20: #{tpu_custom_call.1} parent=1 // pred_region
      %57 = dma.done [#allocation4], 256
    $region21: #{tpu_custom_call.1} parent=1 // pred_fallthru
      _
    // Predicated region
    $region22: #{tpu_custom_call.1} parent=1 // pred_check
      _
    $region23: #{tpu_custom_call.1} parent=1 // pred_check_branch
      %59 = sbr.rel (0) target = $region25
    $region24: #{tpu_custom_call.1} parent=1 // pred_region
      %61 = dma.done [#allocation7], 256
    $region25: #{tpu_custom_call.1} parent=1 // pred_fallthru
      _
    %62 = vsyncpa [#allocation3], 1
    %63 = vsyncpa [#allocation4], 1
    %64 = vsyncpa [#allocation7], 1

</llo_original>
